<compile_context>
chip_gen: v5e
topology: v5e:2x2
jax: 0.10.0
libtpu: 0.0.40
codegen_flags: <defaults>
</compile_context>

<pallas_src>
import math
import jax
import jax.numpy as jnp
from jax.experimental import pallas as pl
from jax.experimental.pallas import tpu as pltpu


def _round_up(a, b):
    return (a + b - 1) // b * b


def _gcn_layer_kernel(sup_ref, adj_ref, b_ref, out_ref, acc_ref):
    # Grid: (row tiles of adj, K tiles of the contraction dim).
    k = pl.program_id(1)

    @pl.when(k == 0)
    def _():
        acc_ref[...] = jnp.zeros_like(acc_ref)

    # bf16 adj tile @ bf16 support strip on the MXU, f32 accumulation.
    acc_ref[...] += jnp.dot(
        adj_ref[...], sup_ref[...], preferred_element_type=jnp.float32
    )

    @pl.when(k == pl.num_programs(1) - 1)
    def _():
        out_ref[...] = jnp.maximum(acc_ref[...] + b_ref[...], 0.0)


def _vmem_budget_bytes(tm, tk, f_pad):
    est = (
        2 * tm * tk * 2        # adj tile, bf16, double-buffered
        + 2 * tk * f_pad * 2   # support strip, bf16, double-buffered
        + 2 * tm * f_pad * 4   # output tile, f32, double-buffered
        + tm * f_pad * 4       # f32 accumulator scratch
        + 2 * 8 * f_pad * 4    # padded bias
    )
    # 4x slack for compiler scratch/layout, capped under v7x's 64 MiB.
    return int(min(max(4 * est, 8 << 20), 48 << 20))


def gcn_layer(x, adj_p, w, b, *, n, tm, tk):
    """One GCN layer: relu(adj @ (x @ w) + b).

    adj_p : (n_rows, n_cols) bf16, zero-padded, pre-cast (shared by layers).
    x     : (n, f_in) f32 (unpadded).
    """
    n_rows, n_cols = adj_p.shape
    f_out = w.shape[1]
    f_pad = _round_up(f_out, 128)

    # support = x @ W computed ONCE (tiny XLA matmul), lane-dense padded and
    # pre-cast to bf16 so the pallas_call only streams bf16 bytes from HBM.
    support = jnp.dot(x, w, preferred_element_type=jnp.float32)
    support = jnp.pad(support, ((0, n_cols - n), (0, f_pad - f_out)))
    support = support.astype(jnp.bfloat16)

    b_p = jnp.pad(b.reshape(1, f_out), ((0, 0), (0, f_pad - f_out)))

    grid = (n_rows // tm, n_cols // tk)

    out = pl.pallas_call(
        _gcn_layer_kernel,
        out_shape=jax.ShapeDtypeStruct((n_rows, f_pad), jnp.float32),
        grid_spec=pltpu.PrefetchScalarGridSpec(
            num_scalar_prefetch=0,
            grid=grid,
            in_specs=[
                pl.BlockSpec((tk, f_pad), lambda i, k: (k, 0)),  # support strip
                pl.BlockSpec((tm, tk), lambda i, k: (i, k)),     # adj tile (bf16)
                pl.BlockSpec((1, f_pad), lambda i, k: (0, 0)),   # bias (resident)
            ],
            out_specs=pl.BlockSpec((tm, f_pad), lambda i, k: (i, 0)),
            scratch_shapes=[pltpu.VMEM((tm, f_pad), jnp.float32)],
        ),
        compiler_params=pltpu.CompilerParams(
            dimension_semantics=("parallel", "arbitrary"),
            vmem_limit_bytes=_vmem_budget_bytes(tm, tk, f_pad),
        ),
    )(support, adj_p, b_p)

    return out[:n, :f_out]


def gcn_decoder_forward(x, adj, params, *, tm=512, tk=1024):
    """GCNdecoder.forward (eval mode). x: (N, nfeat), adj: (N, N) dense f32."""
    w1, b1, w2, b2 = params
    n = x.shape[0]

    # Tile sizes: clamp to (padded) graph size; keep sublane/lane alignment.
    tm = min(tm, _round_up(n, 16))
    tk = min(tk, _round_up(n, 128))
    n_rows = _round_up(n, tm)
    n_cols = _round_up(n, tk)

    # Cast adjacency to bf16 (and zero-pad to the tile grid) exactly once,
    # outside the kernels, so BOTH layers stream half the HBM bytes and the
    # contraction-dim padding contributes exact zeros.
    adj_p = jnp.pad(adj, ((0, n_rows - n), (0, n_cols - n))).astype(jnp.bfloat16)

    h1 = gcn_layer(x, adj_p, w1, b1, n=n, tm=tm, tk=tk)
    # TODO(synk): F.dropout(h1, p, training) -> identity in eval mode.
    h2 = gcn_layer(h1, adj_p, w2, b2, n=n, tm=tm, tk=tk)
    # TODO(synk): F.dropout(h2, p, training) -> identity in eval mode.
    return h2


def init_gcn_params(key, in_features, out_features):
    """Matches GCN.reset_parameters: uniform(-stdv, stdv), stdv = 1/sqrt(out)."""
    stdv = 1.0 / math.sqrt(out_features)
    kw, kb = jax.random.split(key)
    w = jax.random.uniform(kw, (in_features, out_features), jnp.float32, -stdv, stdv)
    b = jax.random.uniform(kb, (1, out_features), jnp.float32, -stdv, stdv)
    return w, b


def init_decoder_params(key, nfeat, nhid, nout):
    k1, k2 = jax.random.split(key)
    w1, b1 = init_gcn_params(k1, nfeat, nhid)
    w2, b2 = init_gcn_params(k2, nhid, nout)
    return (w1, b1, w2, b2)


if __name__ == "__main__":
    N = 256        # graph nodes
    NFEAT = 64
    NHID = 32
    NOUT = 16

    key = jax.random.PRNGKey(0)
    kx, kadj, kp = jax.random.split(key, 3)

    x = jax.random.normal(kx, (N, NFEAT), jnp.float32)

    # symmetric adjacency with self loops, row-normalized
    a_raw = (jax.random.uniform(kadj, (N, N)) > 0.9).astype(jnp.float32)
    adj = a_raw + a_raw.T + jnp.eye(N, dtype=jnp.float32)
    adj = adj / jnp.sum(adj, axis=1, keepdims=True)

    params = init_decoder_params(kp, NFEAT, NHID, NOUT)

    out = gcn_decoder_forward(x, adj, params)
    jax.block_until_ready(out)

    # plain-JAX f32 reference (kernel uses bf16 adj/support -> loose tolerance;
    # bf16 error compounds across the two layers, acceptable for eval-mode GCN).
    w1, b1, w2, b2 = params
    h1_ref = jax.nn.relu(adj @ (x @ w1) + b1)
    h2_ref = jax.nn.relu(adj @ (h1_ref @ w2) + b2)

    assert out.shape == (N, NOUT), f"bad output shape {out.shape}"
    assert jnp.allclose(out, h2_ref, atol=5e-2, rtol=5e-2), (
        "GCNdecoder kernel mismatch: max abs err = "
        f"{float(jnp.max(jnp.abs(out - h2_ref)))}"
    )

    print("KERNEL_OK")
</pallas_src>

<mosaic_0001>
module attributes {stable_mosaic.version = 11 : i64} {
  func.func @_gcn_layer_kernel(%arg0: i32, %arg1: i32, %arg2: memref<256x128xbf16, #tpu.memory_space<vmem>>, %arg3: memref<256x256xbf16, #tpu.memory_space<vmem>>, %arg4: memref<1x128xf32, #tpu.memory_space<vmem>>, %arg5: memref<256x128xf32, #tpu.memory_space<vmem>>, %arg6: memref<256x128xf32, #tpu.memory_space<vmem>>) attributes {dimension_semantics = [#tpu.dimension_semantics<parallel>, #tpu.dimension_semantics<arbitrary>], iteration_bounds = array<i64: 1, 1>, scalar_prefetch = 0 : i64, scratch_operands = 1 : i64, tpu.core_type = #tpu.core_type<tc>, window_params = [{transform_indices = @transform_0, window_bounds = array<i64: 256, 128>}, {transform_indices = @transform_1, window_bounds = array<i64: 256, 256>}, {pipeline_mode = #tpu.pipeline_mode<synchronous>, transform_indices = @transform_2, window_bounds = array<i64: 1, 128>}, {transform_indices = @transform_3, window_bounds = array<i64: 256, 128>}]} {
    %c0_i32 = arith.constant 0 : i32
    %0 = arith.cmpi eq, %arg1, %c0_i32 : i32
    %1 = arith.extui %0 : i1 to i32
    %c0_i32_0 = arith.constant 0 : i32
    %2 = arith.cmpi ne, %1, %c0_i32_0 : i32
    scf.if %2 {
      %cst_10 = arith.constant 0.000000e+00 : f32
      %12 = vector.broadcast %cst_10 : f32 to vector<256x128xf32>
      %c0_11 = arith.constant 0 : index
      %c0_12 = arith.constant 0 : index
      %13 = vector.load %arg6[%c0_11, %c0_12] : memref<256x128xf32, #tpu.memory_space<vmem>>, vector<256x128xf32>
      tpu.vector_store %arg6[%c0_11, %c0_12], %12 {strides = array<i32>} : memref<256x128xf32, #tpu.memory_space<vmem>>, vector<256x128xf32>,
    } else {
    }
    %c0 = arith.constant 0 : index
    %c0_1 = arith.constant 0 : index
    %3 = vector.load %arg6[%c0, %c0_1] : memref<256x128xf32, #tpu.memory_space<vmem>>, vector<256x128xf32>
    %c0_2 = arith.constant 0 : index
    %c0_3 = arith.constant 0 : index
    %4 = vector.load %arg3[%c0_2, %c0_3] : memref<256x256xbf16, #tpu.memory_space<vmem>>, vector<256x256xbf16>
    %c0_4 = arith.constant 0 : index
    %c0_5 = arith.constant 0 : index
    %5 = vector.load %arg2[%c0_4, %c0_5] : memref<256x128xbf16, #tpu.memory_space<vmem>>, vector<256x128xbf16>
    %cst = arith.constant dense<0.000000e+00> : vector<256x128xf32>
    %6 = tpu.matmul %4, %5, %cst {dimension_numbers = #tpu.dot_dimension_numbers<[1], [0], [0], [1], [0, 0, 1, 1], [], []>} : vector<256x256xbf16>, vector<256x128xbf16>, vector<256x128xf32> -> vector<256x128xf32>
    %7 = arith.addf %3, %6 : vector<256x128xf32>
    %c0_6 = arith.constant 0 : index
    %c0_7 = arith.constant 0 : index
    %8 = vector.load %arg6[%c0_6, %c0_7] : memref<256x128xf32, #tpu.memory_space<vmem>>, vector<256x128xf32>
    tpu.vector_store %arg6[%c0_6, %c0_7], %7 {strides = array<i32>} : memref<256x128xf32, #tpu.memory_space<vmem>>, vector<256x128xf32>,
    %c0_i32_8 = arith.constant 0 : i32
    %9 = arith.cmpi eq, %arg1, %c0_i32_8 : i32
    %10 = arith.extui %9 : i1 to i32
    %c0_i32_9 = arith.constant 0 : i32
    %11 = arith.cmpi ne, %10, %c0_i32_9 : i32
    scf.if %11 {
      %c0_10 = arith.constant 0 : index
      %c0_11 = arith.constant 0 : index
      %12 = vector.load %arg6[%c0_10, %c0_11] : memref<256x128xf32, #tpu.memory_space<vmem>>, vector<256x128xf32>
      %c0_12 = arith.constant 0 : index
      %c0_13 = arith.constant 0 : index
      %13 = vector.load %arg4[%c0_12, %c0_13] : memref<1x128xf32, #tpu.memory_space<vmem>>, vector<1x128xf32>
      %14 = vector.broadcast %13 : vector<1x128xf32> to vector<256x128xf32>
      %15 = arith.addf %12, %14 : vector<256x128xf32>
      %cst_14 = arith.constant 0.000000e+00 : f32
      %16 = vector.broadcast %cst_14 : f32 to vector<256x128xf32>
      %17 = arith.maximumf %15, %16 : vector<256x128xf32>
      %c0_15 = arith.constant 0 : index
      %c0_16 = arith.constant 0 : index
      %18 = vector.load %arg5[%c0_15, %c0_16] : memref<256x128xf32, #tpu.memory_space<vmem>>, vector<256x128xf32>
      tpu.vector_store %arg5[%c0_15, %c0_16], %17 {strides = array<i32>} : memref<256x128xf32, #tpu.memory_space<vmem>>, vector<256x128xf32>,
    } else {
    }
    return
  }
  func.func @transform_0(%arg0: i32, %arg1: i32) -> (i32, i32) {
    %c0_i32 = arith.constant 0 : i32
    %c0_i32_0 = arith.constant 0 : i32
    return %arg1, %c0_i32 : i32, i32
  }
  func.func @transform_1(%arg0: i32, %arg1: i32) -> (i32, i32) {
    %c0_i32 = arith.constant 0 : i32
    return %arg0, %arg1 : i32, i32
  }
  func.func @transform_2(%arg0: i32, %arg1: i32) -> (i32, i32) {
    %c0_i32 = arith.constant 0 : i32
    %c0_i32_0 = arith.constant 0 : i32
    %c0_i32_1 = arith.constant 0 : i32
    return %c0_i32, %c0_i32_0 : i32, i32
  }
  func.func @transform_3(%arg0: i32, %arg1: i32) -> (i32, i32) {
    %c0_i32 = arith.constant 0 : i32
    %c0_i32_0 = arith.constant 0 : i32
    return %arg0, %c0_i32 : i32, i32
  }
}

</mosaic_0001>

<llo_original>
// kernel: tpu_custom_call.1
$region0: #{tpu_custom_call.1}
  #allocation0 [shape = 'u32[]', space=smem, size = 0x4, offset = 0x4, fixed_abs, tag = 'smem constant byte address 0x4 - core index']
  #allocation1 [shape = 'u32[72,128]{1,0:T(1,128)}', space=vmem, size = 0x9000, scoped, tag = 'internal scratch']
  #allocation2 [shape = 'f32[256,128]{1,0:T(8,128)}', space=vmem, size = 0x20000, scoped, tag = 'scratch operand']
  %s0 = inlined_call_operand.hbm [shape: bf16[256,128], index: 0, kind: input, shape index: {}]
  %s1 = inlined_call_operand.hbm [shape: bf16[256,256], index: 1, kind: input, shape index: {}]
  %s2 = inlined_call_operand.vmem [shape: f32[1,128], index: 2, kind: input, shape index: {}]
  %s3 = inlined_call_operand.hbm [shape: f32[256,128], index: 3, kind: output, shape index: {}]
  %s4 = sld [smem:[#allocation0]]
  $region38: #{tpu_custom_call.1} parent=0
    _
  %s6 = ssub.s32 1, %s4
  %s7 = scalar_select 0, %s6, %s4
  $region1: #{tpu_custom_call.1} parent=0
    #allocation3 [shape = 'u8[65536]{0}', space=vmem, size = 0x10000, scoped, tag = 'input window, operand 0, single buffered']
    #allocation4 [shape = 's32[1]{0}', space=sflag, size = 0x4, scoped, tag = 'scoped memory for tpu_custom_call.1']
    #allocation5 [shape = 's32[1]{0}', space=sflag, size = 0x4, scoped, tag = 'scoped memory for tpu_custom_call.1']
    #allocation6 [shape = 'u8[131072]{0}', space=vmem, size = 0x20000, scoped, tag = 'input window, operand 1, single buffered']
    #allocation7 [shape = 's32[1]{0}', space=sflag, size = 0x4, scoped, tag = 'scoped memory for tpu_custom_call.1']
    #allocation8 [shape = 'u8[131072]{0}', space=vmem, size = 0x20000, scoped, tag = 'output window, operand 0, single buffered']
    %8 = vsyncpa [#allocation4], 0
    %9 = vsyncpa [#allocation7], 0
    %10 = vsyncpa [#allocation5], 0
    // Predicated region
    $region2: #{tpu_custom_call.1} parent=1 // pred_check
      _
    $region3: #{tpu_custom_call.1} parent=1 // pred_check_branch
      %12 = sbr.rel (0) target = $region5
    $region4: #{tpu_custom_call.1} parent=1 // pred_region
      %14 = vsyncadd [#allocation4], 0
      %s15 = sshll.u32 %s0, 4
      %s16 = int_to_ptr.hbm [resolvable:$true] %s15
      %s17 = sshll.u32 [#allocation3], 4
      %s18 = int_to_ptr.vmem [resolvable:$true] %s17
      %23 = dma.hbm_to_vmem [thread:$0]  %s16, 2048, %s18, [#allocation4], 64, 64, 4
    $region5: #{tpu_custom_call.1} parent=1 // pred_fallthru
      _
    // Predicated region
    $region6: #{tpu_custom_call.1} parent=1 // pred_check
      _
    $region7: #{tpu_custom_call.1} parent=1 // pred_check_branch
      %25 = sbr.rel (0) target = $region9
    $region8: #{tpu_custom_call.1} parent=1 // pred_region
      %27 = vsyncadd [#allocation7], 0
      %s28 = sshll.u32 %s1, 4
      %s29 = int_to_ptr.hbm [resolvable:$true] %s28
      %s30 = sshll.u32 [#allocation6], 4
      %s31 = int_to_ptr.vmem [resolvable:$true] %s30
      %36 = dma.hbm_to_vmem [thread:$0]  %s29, 4096, %s31, [#allocation7], 128, 128, 8
    $region9: #{tpu_custom_call.1} parent=1 // pred_fallthru
      _
    // Predicated region
    $region10: #{tpu_custom_call.1} parent=1 // pred_check
      _
    $region11: #{tpu_custom_call.1} parent=1 // pred_check_branch
      %38 = sbr.rel (0) target = $region13
    $region12: #{tpu_custom_call.1} parent=1 // pred_region
      _
    $region13: #{tpu_custom_call.1} parent=1 // pred_fallthru
      _
    // Predicated region
    $region14: #{tpu_custom_call.1} parent=1 // pred_check
      _
    $region15: #{tpu_custom_call.1} parent=1 // pred_check_branch
      %40 = sbr.rel (0) target = $region17
    $region16: #{tpu_custom_call.1} parent=1 // pred_region
      %42 = dma.done [#allocation4], 2048
    $region17: #{tpu_custom_call.1} parent=1 // pred_fallthru
      _
    // Predicated region
    $region18: #{tpu_custom_call.1} parent=1 // pred_check
      _
    $region19: #{tpu_custom_call.1} parent=1 // pred_check_branch
      %44 = sbr.rel (0) target = $region21
    $region20: #{tpu_custom_call.1} parent=1 // pred_region
      %46 = dma.done [#allocation7], 4096
    $region21: #{tpu_custom_call.1} parent=1 // pred_fallthru
      _
    %p47 = scmp.eq.s32.totalorder 0, 0
    // Predicated region
    $region22: #{tpu_custom_call.1} parent=1 // pred_check
      %p48 = pneg %p47
    $region23: #{tpu_custom_call.1} parent=1 // pred_check_branch
      %50 = sbr.rel (%p48) target = $region25
    $region24: #{tpu_custom_call.1} parent=1 // pred_region
      %51 = vst [vmem:[#allocation2] sm:$0xff] 0.0
      %52 = vst [vmem:[#allocation2 + $0x8] sm:$0xff] 0.0
      %53 = vst [vmem:[#allocation2 + $0x10] sm:$0xff] 0.0
      %54 = vst [vmem:[#allocation2 + $0x18] sm:$0xff] 0.0
      %55 = vst [vmem:[#allocation2 + $0x20] sm:$0xff] 0.0
      %56 = vst [vmem:[#allocation2 + $0x28] sm:$0xff] 0.0
      %57 = vst [vmem:[#allocation2 + $0x30] sm:$0xff] 0.0
      %58 = vst [vmem:[#allocation2 + $0x38] sm:$0xff] 0.0
      %59 = vst [vmem:[#allocation2 + $0x40] sm:$0xff] 0.0
      %60 = vst [vmem:[#allocation2 + $0x48] sm:$0xff] 0.0
      %61 = vst [vmem:[#allocation2 + $0x50] sm:$0xff] 0.0
      %62 = vst [vmem:[#allocation2 + $0x58] sm:$0xff] 0.0
      %63 = vst [vmem:[#allocation2 + $0x60] sm:$0xff] 0.0
      %64 = vst [vmem:[#allocation2 + $0x68] sm:$0xff] 0.0
      %65 = vst [vmem:[#allocation2 + $0x70] sm:$0xff] 0.0
      %66 = vst [vmem:[#allocation2 + $0x78] sm:$0xff] 0.0
      %67 = vst [vmem:[#allocation2 + $0x80] sm:$0xff] 0.0
      %68 = vst [vmem:[#allocation2 + $0x88] sm:$0xff] 0.0
      %69 = vst [vmem:[#allocation2 + $0x90] sm:$0xff] 0.0
      %70 = vst [vmem:[#allocation2 + $0x98] sm:$0xff] 0.0
      %71 = vst [vmem:[#allocation2 + $0xa0] sm:$0xff] 0.0
      %72 = vst [vmem:[#allocation2 + $0xa8] sm:$0xff] 0.0
      %73 = vst [vmem:[#allocation2 + $0xb0] sm:$0xff] 0.0
      %74 = vst [vmem:[#allocation2 + $0xb8] sm:$0xff] 0.0
      %75 = vst [vmem:[#allocation2 + $0xc0] sm:$0xff] 0.0
      %76 = vst [vmem:[#allocation2 + $0xc8] sm:$0xff] 0.0
      %77 = vst [vmem:[#allocation2 + $0xd0] sm:$0xff] 0.0
      %78 = vst [vmem:[#allocation2 + $0xd8] sm:$0xff] 0.0
      %79 = vst [vmem:[#allocation2 + $0xe0] sm:$0xff] 0.0
      %80 = vst [vmem:[#allocation2 + $0xe8] sm:$0xff] 0.0
      %81 = vst [vmem:[#allocation2 + $0xf0] sm:$0xff] 0.0
      %82 = vst [vmem:[#allocation2 + $0xf8] sm:$0xff] 0.0
    $region25: #{tpu_custom_call.1} parent=1 // pred_fallthru
      _
    %v83 = vld [vmem:[#allocation2] sm:$0xff]
    %v84 = vld [vmem:[#allocation2 + $0x8] sm:$0xff]
    %v85 = vld [vmem:[#allocation2 + $0x10] sm:$0xff]
    %v86 = vld [vmem:[#allocation2 + $0x18] sm:$0xff]
    %v87 = vld [vmem:[#allocation2 + $0x20] sm:$0xff]
    %v88 = vld [vmem:[#allocation2 + $0x28] sm:$0xff]
    %v89 = vld [vmem:[#allocation2 + $0x30] sm:$0xff]
    %v90 = vld [vmem:[#allocation2 + $0x38] sm:$0xff]
    %v91 = vld [vmem:[#allocation2 + $0x40] sm:$0xff]
    %v92 = vld [vmem:[#allocation2 + $0x48] sm:$0xff]
    %v93 = vld [vmem:[#allocation2 + $0x50] sm:$0xff]
    %v94 = vld [vmem:[#allocation2 + $0x58] sm:$0xff]
    %v95 = vld [vmem:[#allocation2 + $0x60] sm:$0xff]
    %v96 = vld [vmem:[#allocation2 + $0x68] sm:$0xff]
    %v97 = vld [vmem:[#allocation2 + $0x70] sm:$0xff]
    %v98 = vld [vmem:[#allocation2 + $0x78] sm:$0xff]
    %v99 = vld [vmem:[#allocation2 + $0x80] sm:$0xff]
    %v100 = vld [vmem:[#allocation2 + $0x88] sm:$0xff]
    %v101 = vld [vmem:[#allocation2 + $0x90] sm:$0xff]
    %v102 = vld [vmem:[#allocation2 + $0x98] sm:$0xff]
    %v103 = vld [vmem:[#allocation2 + $0xa0] sm:$0xff]
    %v104 = vld [vmem:[#allocation2 + $0xa8] sm:$0xff]
    %v105 = vld [vmem:[#allocation2 + $0xb0] sm:$0xff]
    %v106 = vld [vmem:[#allocation2 + $0xb8] sm:$0xff]
    %v107 = vld [vmem:[#allocation2 + $0xc0] sm:$0xff]
    %v108 = vld [vmem:[#allocation2 + $0xc8] sm:$0xff]
    %v109 = vld [vmem:[#allocation2 + $0xd0] sm:$0xff]
    %v110 = vld [vmem:[#allocation2 + $0xd8] sm:$0xff]
    %v111 = vld [vmem:[#allocation2 + $0xe0] sm:$0xff]
    %v112 = vld [vmem:[#allocation2 + $0xe8] sm:$0xff]
    %v113 = vld [vmem:[#allocation2 + $0xf0] sm:$0xff]
    %v114 = vld [vmem:[#allocation2 + $0xf8] sm:$0xff]
    %v115 = vld [vmem:[#allocation6] sm:$0xff]
    %v116 = vld [vmem:[#allocation6 + $0x8] sm:$0xff]
    %v117 = vld [vmem:[#allocation6 + $0x10] sm:$0xff]
    %v118 = vld [vmem:[#allocation6 + $0x18] sm:$0xff]
    %v119 = vld [vmem:[#allocation6 + $0x20] sm:$0xff]
    %v120 = vld [vmem:[#allocation6 + $0x28] sm:$0xff]
    %v121 = vld [vmem:[#allocation6 + $0x30] sm:$0xff]
    %v122 = vld [vmem:[#allocation6 + $0x38] sm:$0xff]
    %v123 = vld [vmem:[#allocation6 + $0x40] sm:$0xff]
    %v124 = vld [vmem:[#allocation6 + $0x48] sm:$0xff]
    %v125 = vld [vmem:[#allocation6 + $0x50] sm:$0xff]
    %v126 = vld [vmem:[#allocation6 + $0x58] sm:$0xff]
    %v127 = vld [vmem:[#allocation6 + $0x60] sm:$0xff]
    %v128 = vld [vmem:[#allocation6 + $0x68] sm:$0xff]
    %v129 = vld [vmem:[#allocation6 + $0x70] sm:$0xff]
    %v130 = vld [vmem:[#allocation6 + $0x78] sm:$0xff]
    %v131 = vld [vmem:[#allocation6 + $0x80] sm:$0xff]
    %v132 = vld [vmem:[#allocation6 + $0x88] sm:$0xff]
    %v133 = vld [vmem:[#allocation6 + $0x90] sm:$0xff]
    %v134 = vld [vmem:[#allocation6 + $0x98] sm:$0xff]
    %v135 = vld [vmem:[#allocation6 + $0xa0] sm:$0xff]
    %v136 = vld [vmem:[#allocation6 + $0xa8] sm:$0xff]
    %v137 = vld [vmem:[#allocation6 + $0xb0] sm:$0xff]
    %v138 = vld [vmem:[#allocation6 + $0xb8] sm:$0xff]
    %v139 = vld [vmem:[#allocation6 + $0xc0] sm:$0xff]
    %v140 = vld [vmem:[#allocation6 + $0xc8] sm:$0xff]
    %v141 = vld [vmem:[#allocation6 + $0xd0] sm:$0xff]
    %v142 = vld [vmem:[#allocation6 + $0xd8] sm:$0xff]
    %v143 = vld [vmem:[#allocation6 + $0xe0] sm:$0xff]
    %v144 = vld [vmem:[#allocation6 + $0xe8] sm:$0xff]
    %v145 = vld [vmem:[#allocation6 + $0xf0] sm:$0xff]
    %v146 = vld [vmem:[#allocation6 + $0xf8] sm:$0xff]
    %v147 = vld [vmem:[#allocation3] sm:$0xf]
    %v148 = vld [vmem:[#allocation3 + $0x4] sm:$0xf]
    %v149 = vld [vmem:[#allocation3 + $0x8] sm:$0xf]
    %v150 = vld [vmem:[#allocation3 + $0xc] sm:$0xf]
    %v151 = vld [vmem:[#allocation3 + $0x10] sm:$0xf]
    %v152 = vld [vmem:[#allocation3 + $0x14] sm:$0xf]
    %v153 = vld [vmem:[#allocation3 + $0x18] sm:$0xf]
    %v154 = vld [vmem:[#allocation3 + $0x1c] sm:$0xf]
    %v155 = vld [vmem:[#allocation3 + $0x20] sm:$0xf]
    %v156 = vld [vmem:[#allocation3 + $0x24] sm:$0xf]
    %v157 = vld [vmem:[#allocation3 + $0x28] sm:$0xf]
    %v158 = vld [vmem:[#allocation3 + $0x2c] sm:$0xf]
    %v159 = vld [vmem:[#allocation3 + $0x30] sm:$0xf]
    %v160 = vld [vmem:[#allocation3 + $0x34] sm:$0xf]
    %v161 = vld [vmem:[#allocation3 + $0x38] sm:$0xf]
    %v162 = vld [vmem:[#allocation3 + $0x3c] sm:$0xf]
    %v163 = vld [vmem:[#allocation3 + $0x40] sm:$0xf]
    %v164 = vld [vmem:[#allocation3 + $0x44] sm:$0xf]
    %v165 = vld [vmem:[#allocation3 + $0x48] sm:$0xf]
    %v166 = vld [vmem:[#allocation3 + $0x4c] sm:$0xf]
    %v167 = vld [vmem:[#allocation3 + $0x50] sm:$0xf]
    %v168 = vld [vmem:[#allocation3 + $0x54] sm:$0xf]
    %v169 = vld [vmem:[#allocation3 + $0x58] sm:$0xf]
    %v170 = vld [vmem:[#allocation3 + $0x5c] sm:$0xf]
    %v171 = vld [vmem:[#allocation3 + $0x60] sm:$0xf]
    %v172 = vld [vmem:[#allocation3 + $0x64] sm:$0xf]
    %v173 = vld [vmem:[#allocation3 + $0x68] sm:$0xf]
    %v174 = vld [vmem:[#allocation3 + $0x6c] sm:$0xf]
    %v175 = vld [vmem:[#allocation3 + $0x70] sm:$0xf]
    %v176 = vld [vmem:[#allocation3 + $0x74] sm:$0xf]
    %v177 = vld [vmem:[#allocation3 + $0x78] sm:$0xf]
    %v178 = vld [vmem:[#allocation3 + $0x7c] sm:$0xf]
    %v211 = vunpack.c.l.b16 %v115
    %v212 = vunpack.c.h.b16 %v115
    %v213 = vunpack.c.l.b16 %v116
    %v214 = vunpack.c.h.b16 %v116
    %v215 = vunpack.c.l.b16 %v117
    %v216 = vunpack.c.h.b16 %v117
    %v217 = vunpack.c.l.b16 %v118
    %v218 = vunpack.c.h.b16 %v118
    %v219 = vunpack.c.l.b16 %v119
    %v220 = vunpack.c.h.b16 %v119
    %v221 = vunpack.c.l.b16 %v120
    %v222 = vunpack.c.h.b16 %v120
    %v223 = vunpack.c.l.b16 %v121
    %v224 = vunpack.c.h.b16 %v121
    %v225 = vunpack.c.l.b16 %v122
    %v226 = vunpack.c.h.b16 %v122
    %v227 = vunpack.c.l.b16 %v123
    %v228 = vunpack.c.h.b16 %v123
    %v229 = vunpack.c.l.b16 %v124
    %v230 = vunpack.c.h.b16 %v124
    %v231 = vunpack.c.l.b16 %v125
    %v232 = vunpack.c.h.b16 %v125
    %v233 = vunpack.c.l.b16 %v126
    %v234 = vunpack.c.h.b16 %v126
    %v235 = vunpack.c.l.b16 %v127
    %v236 = vunpack.c.h.b16 %v127
    %v237 = vunpack.c.l.b16 %v128
    %v238 = vunpack.c.h.b16 %v128
    %v239 = vunpack.c.l.b16 %v129
    %v240 = vunpack.c.h.b16 %v129
    %v241 = vunpack.c.l.b16 %v130
    %v242 = vunpack.c.h.b16 %v130
    %v243 = vunpack.c.l.b16 %v131
    %v244 = vunpack.c.h.b16 %v131
    %v245 = vunpack.c.l.b16 %v132
    %v246 = vunpack.c.h.b16 %v132
    %v247 = vunpack.c.l.b16 %v133
    %v248 = vunpack.c.h.b16 %v133
    %v249 = vunpack.c.l.b16 %v134
    %v250 = vunpack.c.h.b16 %v134
    %v251 = vunpack.c.l.b16 %v135
    %v252 = vunpack.c.h.b16 %v135
    %v253 = vunpack.c.l.b16 %v136
    %v254 = vunpack.c.h.b16 %v136
    %v255 = vunpack.c.l.b16 %v137
    %v256 = vunpack.c.h.b16 %v137
    %v257 = vunpack.c.l.b16 %v138
    %v258 = vunpack.c.h.b16 %v138
    %v259 = vunpack.c.l.b16 %v139
    %v260 = vunpack.c.h.b16 %v139
    %v261 = vunpack.c.l.b16 %v140
    %v262 = vunpack.c.h.b16 %v140
    %v263 = vunpack.c.l.b16 %v141
    %v264 = vunpack.c.h.b16 %v141
    %v265 = vunpack.c.l.b16 %v142
    %v266 = vunpack.c.h.b16 %v142
    %v267 = vunpack.c.l.b16 %v143
    %v268 = vunpack.c.h.b16 %v143
    %v269 = vunpack.c.l.b16 %v144
    %v270 = vunpack.c.h.b16 %v144
    %v271 = vunpack.c.l.b16 %v145
    %v272 = vunpack.c.h.b16 %v145
    %v273 = vunpack.c.l.b16 %v146
    %v274 = vunpack.c.h.b16 %v146
    %v275 = vpack.c.b16 %v213, %v211
    %v276 = vpack.c.b16 %v214, %v212
    %v277 = vpack.c.b16 %v217, %v215
    %v278 = vpack.c.b16 %v218, %v216
    %v279 = vpack.c.b16 %v221, %v219
    %v280 = vpack.c.b16 %v222, %v220
    %v281 = vpack.c.b16 %v225, %v223
    %v282 = vpack.c.b16 %v226, %v224
    %v283 = vpack.c.b16 %v229, %v227
    %v284 = vpack.c.b16 %v230, %v228
    %v285 = vpack.c.b16 %v233, %v231
    %v286 = vpack.c.b16 %v234, %v232
    %v287 = vpack.c.b16 %v237, %v235
    %v288 = vpack.c.b16 %v238, %v236
    %v289 = vpack.c.b16 %v241, %v239
    %v290 = vpack.c.b16 %v242, %v240
    %v291 = vpack.c.b16 %v245, %v243
    %v292 = vpack.c.b16 %v246, %v244
    %v293 = vpack.c.b16 %v249, %v247
    %v294 = vpack.c.b16 %v250, %v248
    %v295 = vpack.c.b16 %v253, %v251
    %v296 = vpack.c.b16 %v254, %v252
    %v297 = vpack.c.b16 %v257, %v255
    %v298 = vpack.c.b16 %v258, %v256
    %v299 = vpack.c.b16 %v261, %v259
    %v300 = vpack.c.b16 %v262, %v260
    %v301 = vpack.c.b16 %v265, %v263
    %v302 = vpack.c.b16 %v266, %v264
    %v303 = vpack.c.b16 %v269, %v267
    %v304 = vpack.c.b16 %v270, %v268
    %v305 = vpack.c.b16 %v273, %v271
    %v306 = vpack.c.b16 %v274, %v272
    %v371 = vunpack.c.l.b16 %v147
    %v372 = vunpack.c.l.b16 %v148
    %v373 = vunpack.c.l.b16 %v149
    %v374 = vunpack.c.l.b16 %v150
    %v375 = vunpack.c.l.b16 %v151
    %v376 = vunpack.c.l.b16 %v152
    %v377 = vunpack.c.l.b16 %v153
    %v378 = vunpack.c.l.b16 %v154
    %v379 = vunpack.c.l.b16 %v155
    %v380 = vunpack.c.l.b16 %v156
    %v381 = vunpack.c.l.b16 %v157
    %v382 = vunpack.c.l.b16 %v158
    %v383 = vunpack.c.l.b16 %v159
    %v384 = vunpack.c.l.b16 %v160
    %v385 = vunpack.c.l.b16 %v161
    %v386 = vunpack.c.l.b16 %v162
    %v387 = vunpack.c.l.b16 %v163
    %v388 = vunpack.c.l.b16 %v164
    %v389 = vunpack.c.l.b16 %v165
    %v390 = vunpack.c.l.b16 %v166
    %v391 = vunpack.c.l.b16 %v167
    %v392 = vunpack.c.l.b16 %v168
    %v393 = vunpack.c.l.b16 %v169
    %v394 = vunpack.c.l.b16 %v170
    %v395 = vunpack.c.l.b16 %v171
    %v396 = vunpack.c.l.b16 %v172
    %v397 = vunpack.c.l.b16 %v173
    %v398 = vunpack.c.l.b16 %v174
    %v399 = vunpack.c.l.b16 %v175
    %v400 = vunpack.c.l.b16 %v176
    %v401 = vunpack.c.l.b16 %v177
    %v402 = vunpack.c.l.b16 %v178
    %v403 = vpack.c.b16 %v372, %v371
    %v404 = vpack.c.b16 %v374, %v373
    %v405 = vpack.c.b16 %v376, %v375
    %v406 = vpack.c.b16 %v378, %v377
    %v407 = vpack.c.b16 %v380, %v379
    %v408 = vpack.c.b16 %v382, %v381
    %v409 = vpack.c.b16 %v384, %v383
    %v410 = vpack.c.b16 %v386, %v385
    %v411 = vpack.c.b16 %v388, %v387
    %v412 = vpack.c.b16 %v390, %v389
    %v413 = vpack.c.b16 %v392, %v391
    %v414 = vpack.c.b16 %v394, %v393
    %v415 = vpack.c.b16 %v396, %v395
    %v416 = vpack.c.b16 %v398, %v397
    %v417 = vpack.c.b16 %v400, %v399
    %v418 = vpack.c.b16 %v402, %v401
    %435 = vmatpush.bf16.msra.mxu0 %v410
    %436 = vmatpush.bf16.msra.mxu0 %v409
    %437 = vmatpush.bf16.msra.mxu0 %v408
    %438 = vmatpush.bf16.msra.mxu0 %v407
    %439 = vmatpush.bf16.msra.mxu0 %v406
    %440 = vmatpush.bf16.msra.mxu0 %v405
    %441 = vmatpush.bf16.msra.mxu0 %v404
    %442 = vmatpush.bf16.msra.mxu0 %v403
    %443 = vmatmul.bf16.gmra.mxu0 %v275
    %v444 = vpop.f32.mrf.mxu0
    %v445 = vadd.f32 0.0, %v444
    %v446 = vpop.f32.mrf.mxu0
    %v447 = vadd.f32 0.0, %v446
    %448 = vmatmul.bf16.gmra.mxu0 %v277
    %v449 = vpop.f32.mrf.mxu0
    %v450 = vadd.f32 0.0, %v449
    %v451 = vpop.f32.mrf.mxu0
    %v452 = vadd.f32 0.0, %v451
    %453 = vmatmul.bf16.gmra.mxu0 %v279
    %v454 = vpop.f32.mrf.mxu0
    %v455 = vadd.f32 0.0, %v454
    %v456 = vpop.f32.mrf.mxu0
    %v457 = vadd.f32 0.0, %v456
    %458 = vmatmul.bf16.gmra.mxu0 %v281
    %v459 = vpop.f32.mrf.mxu0
    %v460 = vadd.f32 0.0, %v459
    %v461 = vpop.f32.mrf.mxu0
    %v462 = vadd.f32 0.0, %v461
    %463 = vmatmul.bf16.gmra.mxu0 %v283
    %v464 = vpop.f32.mrf.mxu0
    %v465 = vadd.f32 0.0, %v464
    %v466 = vpop.f32.mrf.mxu0
    %v467 = vadd.f32 0.0, %v466
    %468 = vmatmul.bf16.gmra.mxu0 %v285
    %v469 = vpop.f32.mrf.mxu0
    %v470 = vadd.f32 0.0, %v469
    %v471 = vpop.f32.mrf.mxu0
    %v472 = vadd.f32 0.0, %v471
    %473 = vmatmul.bf16.gmra.mxu0 %v287
    %v474 = vpop.f32.mrf.mxu0
    %v475 = vadd.f32 0.0, %v474
    %v476 = vpop.f32.mrf.mxu0
    %v477 = vadd.f32 0.0, %v476
    %478 = vmatmul.bf16.gmra.mxu0 %v289
    %v479 = vpop.f32.mrf.mxu0
    %v480 = vadd.f32 0.0, %v479
    %v481 = vpop.f32.mrf.mxu0
    %v482 = vadd.f32 0.0, %v481
    %483 = vmatmul.bf16.gmra.mxu0 %v291
    %v484 = vpop.f32.mrf.mxu0
    %v485 = vadd.f32 0.0, %v484
    %v486 = vpop.f32.mrf.mxu0
    %v487 = vadd.f32 0.0, %v486
    %488 = vmatmul.bf16.gmra.mxu0 %v293
    %v489 = vpop.f32.mrf.mxu0
    %v490 = vadd.f32 0.0, %v489
    %v491 = vpop.f32.mrf.mxu0
    %v492 = vadd.f32 0.0, %v491
    %493 = vmatmul.bf16.gmra.mxu0 %v295
    %v494 = vpop.f32.mrf.mxu0
    %v495 = vadd.f32 0.0, %v494
    %v496 = vpop.f32.mrf.mxu0
    %v497 = vadd.f32 0.0, %v496
    %498 = vmatmul.bf16.gmra.mxu0 %v297
    %v499 = vpop.f32.mrf.mxu0
    %v500 = vadd.f32 0.0, %v499
    %v501 = vpop.f32.mrf.mxu0
    %v502 = vadd.f32 0.0, %v501
    %503 = vmatmul.bf16.gmra.mxu0 %v299
    %v504 = vpop.f32.mrf.mxu0
    %v505 = vadd.f32 0.0, %v504
    %v506 = vpop.f32.mrf.mxu0
    %v507 = vadd.f32 0.0, %v506
    %508 = vmatmul.bf16.gmra.mxu0 %v301
    %v509 = vpop.f32.mrf.mxu0
    %v510 = vadd.f32 0.0, %v509
    %v511 = vpop.f32.mrf.mxu0
    %v512 = vadd.f32 0.0, %v511
    %513 = vmatmul.bf16.gmra.mxu0 %v303
    %v514 = vpop.f32.mrf.mxu0
    %v515 = vadd.f32 0.0, %v514
    %v516 = vpop.f32.mrf.mxu0
    %v517 = vadd.f32 0.0, %v516
    %518 = vmatmul.bf16.gmra.mxu0 %v305
    %v519 = vpop.f32.mrf.mxu0
    %v520 = vadd.f32 0.0, %v519
    %v521 = vpop.f32.mrf.mxu0
    %v522 = vadd.f32 0.0, %v521
    %523 = vdwg.mxu0
    %524 = vmatpush.bf16.msra.mxu0 %v418
    %525 = vmatpush.bf16.msra.mxu0 %v417
    %526 = vmatpush.bf16.msra.mxu0 %v416
    %527 = vmatpush.bf16.msra.mxu0 %v415
    %528 = vmatpush.bf16.msra.mxu0 %v414
    %529 = vmatpush.bf16.msra.mxu0 %v413
    %530 = vmatpush.bf16.msra.mxu0 %v412
    %531 = vmatpush.bf16.msra.mxu0 %v411
    %532 = vmatmul.bf16.gmra.mxu0 %v276
    %v533 = vpop.f32.mrf.mxu0
    %v534 = vadd.f32 %v445, %v533
    %v535 = vpop.f32.mrf.mxu0
    %v536 = vadd.f32 %v447, %v535
    %537 = vmatmul.bf16.gmra.mxu0 %v278
    %v538 = vpop.f32.mrf.mxu0
    %v539 = vadd.f32 %v450, %v538
    %v540 = vpop.f32.mrf.mxu0
    %v541 = vadd.f32 %v452, %v540
    %542 = vmatmul.bf16.gmra.mxu0 %v280
    %v543 = vpop.f32.mrf.mxu0
    %v544 = vadd.f32 %v455, %v543
    %v545 = vpop.f32.mrf.mxu0
    %v546 = vadd.f32 %v457, %v545
    %547 = vmatmul.bf16.gmra.mxu0 %v282
    %v548 = vpop.f32.mrf.mxu0
    %v549 = vadd.f32 %v460, %v548
    %v550 = vpop.f32.mrf.mxu0
    %v551 = vadd.f32 %v462, %v550
    %552 = vmatmul.bf16.gmra.mxu0 %v284
    %v553 = vpop.f32.mrf.mxu0
    %v554 = vadd.f32 %v465, %v553
    %v555 = vpop.f32.mrf.mxu0
    %v556 = vadd.f32 %v467, %v555
    %557 = vmatmul.bf16.gmra.mxu0 %v286
    %v558 = vpop.f32.mrf.mxu0
    %v559 = vadd.f32 %v470, %v558
    %v560 = vpop.f32.mrf.mxu0
    %v561 = vadd.f32 %v472, %v560
    %562 = vmatmul.bf16.gmra.mxu0 %v288
    %v563 = vpop.f32.mrf.mxu0
    %v564 = vadd.f32 %v475, %v563
    %v565 = vpop.f32.mrf.mxu0
    %v566 = vadd.f32 %v477, %v565
    %567 = vmatmul.bf16.gmra.mxu0 %v290
    %v568 = vpop.f32.mrf.mxu0
    %v569 = vadd.f32 %v480, %v568
    %v570 = vpop.f32.mrf.mxu0
    %v571 = vadd.f32 %v482, %v570
    %572 = vmatmul.bf16.gmra.mxu0 %v292
    %v573 = vpop.f32.mrf.mxu0
    %v574 = vadd.f32 %v485, %v573
    %v575 = vpop.f32.mrf.mxu0
    %v576 = vadd.f32 %v487, %v575
    %577 = vmatmul.bf16.gmra.mxu0 %v294
    %v578 = vpop.f32.mrf.mxu0
    %v579 = vadd.f32 %v490, %v578
    %v580 = vpop.f32.mrf.mxu0
    %v581 = vadd.f32 %v492, %v580
    %582 = vmatmul.bf16.gmra.mxu0 %v296
    %v583 = vpop.f32.mrf.mxu0
    %v584 = vadd.f32 %v495, %v583
    %v585 = vpop.f32.mrf.mxu0
    %v586 = vadd.f32 %v497, %v585
    %587 = vmatmul.bf16.gmra.mxu0 %v298
    %v588 = vpop.f32.mrf.mxu0
    %v589 = vadd.f32 %v500, %v588
    %v590 = vpop.f32.mrf.mxu0
    %v591 = vadd.f32 %v502, %v590
    %592 = vmatmul.bf16.gmra.mxu0 %v300
    %v593 = vpop.f32.mrf.mxu0
    %v594 = vadd.f32 %v505, %v593
    %v595 = vpop.f32.mrf.mxu0
    %v596 = vadd.f32 %v507, %v595
    %597 = vmatmul.bf16.gmra.mxu0 %v302
    %v598 = vpop.f32.mrf.mxu0
    %v599 = vadd.f32 %v510, %v598
    %v600 = vpop.f32.mrf.mxu0
    %v601 = vadd.f32 %v512, %v600
    %602 = vmatmul.bf16.gmra.mxu0 %v304
    %v603 = vpop.f32.mrf.mxu0
    %v604 = vadd.f32 %v515, %v603
    %v605 = vpop.f32.mrf.mxu0
    %v606 = vadd.f32 %v517, %v605
    %607 = vmatmul.bf16.gmra.mxu0 %v306
    %v608 = vpop.f32.mrf.mxu0
    %v609 = vadd.f32 %v520, %v608
    %v610 = vpop.f32.mrf.mxu0
    %v611 = vadd.f32 %v522, %v610
    %612 = vdwg.mxu0
    %v613 = vadd.f32 %v83, %v534
    %v614 = vadd.f32 %v84, %v536
    %v615 = vadd.f32 %v85, %v539
    %v616 = vadd.f32 %v86, %v541
    %v617 = vadd.f32 %v87, %v544
    %v618 = vadd.f32 %v88, %v546
    %v619 = vadd.f32 %v89, %v549
    %v620 = vadd.f32 %v90, %v551
    %v621 = vadd.f32 %v91, %v554
    %v622 = vadd.f32 %v92, %v556
    %v623 = vadd.f32 %v93, %v559
    %v624 = vadd.f32 %v94, %v561
    %v625 = vadd.f32 %v95, %v564
    %v626 = vadd.f32 %v96, %v566
    %v627 = vadd.f32 %v97, %v569
    %v628 = vadd.f32 %v98, %v571
    %v629 = vadd.f32 %v99, %v574
    %v630 = vadd.f32 %v100, %v576
    %v631 = vadd.f32 %v101, %v579
    %v632 = vadd.f32 %v102, %v581
    %v633 = vadd.f32 %v103, %v584
    %v634 = vadd.f32 %v104, %v586
    %v635 = vadd.f32 %v105, %v589
    %v636 = vadd.f32 %v106, %v591
    %v637 = vadd.f32 %v107, %v594
    %v638 = vadd.f32 %v108, %v596
    %v639 = vadd.f32 %v109, %v599
    %v640 = vadd.f32 %v110, %v601
    %v641 = vadd.f32 %v111, %v604
    %v642 = vadd.f32 %v112, %v606
    %v643 = vadd.f32 %v113, %v609
    %v644 = vadd.f32 %v114, %v611
    %645 = vst [vmem:[#allocation2] sm:$0xff] %v613
    %646 = vst [vmem:[#allocation2 + $0x8] sm:$0xff] %v614
    %647 = vst [vmem:[#allocation2 + $0x10] sm:$0xff] %v615
    %648 = vst [vmem:[#allocation2 + $0x18] sm:$0xff] %v616
    %649 = vst [vmem:[#allocation2 + $0x20] sm:$0xff] %v617
    %650 = vst [vmem:[#allocation2 + $0x28] sm:$0xff] %v618
    %651 = vst [vmem:[#allocation2 + $0x30] sm:$0xff] %v619
    %652 = vst [vmem:[#allocation2 + $0x38] sm:$0xff] %v620
    %653 = vst [vmem:[#allocation2 + $0x40] sm:$0xff] %v621
    %654 = vst [vmem:[#allocation2 + $0x48] sm:$0xff] %v622
    %655 = vst [vmem:[#allocation2 + $0x50] sm:$0xff] %v623
    %656 = vst [vmem:[#allocation2 + $0x58] sm:$0xff] %v624
    %657 = vst [vmem:[#allocation2 + $0x60] sm:$0xff] %v625
    %658 = vst [vmem:[#allocation2 + $0x68] sm:$0xff] %v626
    %659 = vst [vmem:[#allocation2 + $0x70] sm:$0xff] %v627
    %660 = vst [vmem:[#allocation2 + $0x78] sm:$0xff] %v628
    %661 = vst [vmem:[#allocation2 + $0x80] sm:$0xff] %v629
    %662 = vst [vmem:[#allocation2 + $0x88] sm:$0xff] %v630
    %663 = vst [vmem:[#allocation2 + $0x90] sm:$0xff] %v631
    %664 = vst [vmem:[#allocation2 + $0x98] sm:$0xff] %v632
    %665 = vst [vmem:[#allocation2 + $0xa0] sm:$0xff] %v633
    %666 = vst [vmem:[#allocation2 + $0xa8] sm:$0xff] %v634
    %667 = vst [vmem:[#allocation2 + $0xb0] sm:$0xff] %v635
    %668 = vst [vmem:[#allocation2 + $0xb8] sm:$0xff] %v636
    %669 = vst [vmem:[#allocation2 + $0xc0] sm:$0xff] %v637
    %670 = vst [vmem:[#allocation2 + $0xc8] sm:$0xff] %v638
    %671 = vst [vmem:[#allocation2 + $0xd0] sm:$0xff] %v639
    %672 = vst [vmem:[#allocation2 + $0xd8] sm:$0xff] %v640
    %673 = vst [vmem:[#allocation2 + $0xe0] sm:$0xff] %v641
    %674 = vst [vmem:[#allocation2 + $0xe8] sm:$0xff] %v642
    %675 = vst [vmem:[#allocation2 + $0xf0] sm:$0xff] %v643
    %676 = vst [vmem:[#allocation2 + $0xf8] sm:$0xff] %v644
    // Predicated region
    $region26: #{tpu_custom_call.1} parent=1 // pred_check
      %p677 = pneg %p47
    $region27: #{tpu_custom_call.1} parent=1 // pred_check_branch
      %679 = sbr.rel (%p677) target = $region29
    $region28: #{tpu_custom_call.1} parent=1 // pred_region
      %v680 = vld [vmem:[#allocation2] sm:$0xff]
      %v681 = vld [vmem:[#allocation2 + $0x8] sm:$0xff]
      %v682 = vld [vmem:[#allocation2 + $0x10] sm:$0xff]
      %v683 = vld [vmem:[#allocation2 + $0x18] sm:$0xff]
      %v684 = vld [vmem:[#allocation2 + $0x20] sm:$0xff]
      %v685 = vld [vmem:[#allocation2 + $0x28] sm:$0xff]
      %v686 = vld [vmem:[#allocation2 + $0x30] sm:$0xff]
      %v687 = vld [vmem:[#allocation2 + $0x38] sm:$0xff]
      %v688 = vld [vmem:[#allocation2 + $0x40] sm:$0xff]
      %v689 = vld [vmem:[#allocation2 + $0x48] sm:$0xff]
      %v690 = vld [vmem:[#allocation2 + $0x50] sm:$0xff]
      %v691 = vld [vmem:[#allocation2 + $0x58] sm:$0xff]
      %v692 = vld [vmem:[#allocation2 + $0x60] sm:$0xff]
      %v693 = vld [vmem:[#allocation2 + $0x68] sm:$0xff]
      %v694 = vld [vmem:[#allocation2 + $0x70] sm:$0xff]
      %v695 = vld [vmem:[#allocation2 + $0x78] sm:$0xff]
      %v696 = vld [vmem:[#allocation2 + $0x80] sm:$0xff]
      %v697 = vld [vmem:[#allocation2 + $0x88] sm:$0xff]
      %v698 = vld [vmem:[#allocation2 + $0x90] sm:$0xff]
      %v699 = vld [vmem:[#allocation2 + $0x98] sm:$0xff]
      %v700 = vld [vmem:[#allocation2 + $0xa0] sm:$0xff]
      %v701 = vld [vmem:[#allocation2 + $0xa8] sm:$0xff]
      %v702 = vld [vmem:[#allocation2 + $0xb0] sm:$0xff]
      %v703 = vld [vmem:[#allocation2 + $0xb8] sm:$0xff]
      %v704 = vld [vmem:[#allocation2 + $0xc0] sm:$0xff]
      %v705 = vld [vmem:[#allocation2 + $0xc8] sm:$0xff]
      %v706 = vld [vmem:[#allocation2 + $0xd0] sm:$0xff]
      %v707 = vld [vmem:[#allocation2 + $0xd8] sm:$0xff]
      %v708 = vld [vmem:[#allocation2 + $0xe0] sm:$0xff]
      %v709 = vld [vmem:[#allocation2 + $0xe8] sm:$0xff]
      %v710 = vld [vmem:[#allocation2 + $0xf0] sm:$0xff]
      %v711 = vld [vmem:[#allocation2 + $0xf8] sm:$0xff]
      %v712 = vld [vmem:[%s2] sm:$0x1]
      %v714 = vperm.slane %v712, 0
      %v716 = vadd.f32 %v680, %v714
      %v717 = vadd.f32 %v681, %v714
      %v718 = vadd.f32 %v682, %v714
      %v719 = vadd.f32 %v683, %v714
      %v720 = vadd.f32 %v684, %v714
      %v721 = vadd.f32 %v685, %v714
      %v722 = vadd.f32 %v686, %v714
      %v723 = vadd.f32 %v687, %v714
      %v724 = vadd.f32 %v688, %v714
      %v725 = vadd.f32 %v689, %v714
      %v726 = vadd.f32 %v690, %v714
      %v727 = vadd.f32 %v691, %v714
      %v728 = vadd.f32 %v692, %v714
      %v729 = vadd.f32 %v693, %v714
      %v730 = vadd.f32 %v694, %v714
      %v731 = vadd.f32 %v695, %v714
      %v732 = vadd.f32 %v696, %v714
      %v733 = vadd.f32 %v697, %v714
      %v734 = vadd.f32 %v698, %v714
      %v735 = vadd.f32 %v699, %v714
      %v736 = vadd.f32 %v700, %v714
      %v737 = vadd.f32 %v701, %v714
      %v738 = vadd.f32 %v702, %v714
      %v739 = vadd.f32 %v703, %v714
      %v740 = vadd.f32 %v704, %v714
      %v741 = vadd.f32 %v705, %v714
      %v742 = vadd.f32 %v706, %v714
      %v743 = vadd.f32 %v707, %v714
      %v744 = vadd.f32 %v708, %v714
      %v745 = vadd.f32 %v709, %v714
      %v746 = vadd.f32 %v710, %v714
      %v747 = vadd.f32 %v711, %v714
      %v748 = vmax.f32 %v716, 0.0
      %v749 = vmax.f32 %v717, 0.0
      %v750 = vmax.f32 %v718, 0.0
      %v751 = vmax.f32 %v719, 0.0
      %v752 = vmax.f32 %v720, 0.0
      %v753 = vmax.f32 %v721, 0.0
      %v754 = vmax.f32 %v722, 0.0
      %v755 = vmax.f32 %v723, 0.0
      %v756 = vmax.f32 %v724, 0.0
      %v757 = vmax.f32 %v725, 0.0
      %v758 = vmax.f32 %v726, 0.0
      %v759 = vmax.f32 %v727, 0.0
      %v760 = vmax.f32 %v728, 0.0
      %v761 = vmax.f32 %v729, 0.0
      %v762 = vmax.f32 %v730, 0.0
      %v763 = vmax.f32 %v731, 0.0
      %v764 = vmax.f32 %v732, 0.0
      %v765 = vmax.f32 %v733, 0.0
      %v766 = vmax.f32 %v734, 0.0
      %v767 = vmax.f32 %v735, 0.0
      %v768 = vmax.f32 %v736, 0.0
      %v769 = vmax.f32 %v737, 0.0
      %v770 = vmax.f32 %v738, 0.0
      %v771 = vmax.f32 %v739, 0.0
      %v772 = vmax.f32 %v740, 0.0
      %v773 = vmax.f32 %v741, 0.0
      %v774 = vmax.f32 %v742, 0.0
      %v775 = vmax.f32 %v743, 0.0
      %v776 = vmax.f32 %v744, 0.0
      %v777 = vmax.f32 %v745, 0.0
      %v778 = vmax.f32 %v746, 0.0
      %v779 = vmax.f32 %v747, 0.0
      %780 = vst [vmem:[#allocation8] sm:$0xff] %v748
      %781 = vst [vmem:[#allocation8 + $0x8] sm:$0xff] %v749
      %782 = vst [vmem:[#allocation8 + $0x10] sm:$0xff] %v750
      %783 = vst [vmem:[#allocation8 + $0x18] sm:$0xff] %v751
      %784 = vst [vmem:[#allocation8 + $0x20] sm:$0xff] %v752
      %785 = vst [vmem:[#allocation8 + $0x28] sm:$0xff] %v753
      %786 = vst [vmem:[#allocation8 + $0x30] sm:$0xff] %v754
      %787 = vst [vmem:[#allocation8 + $0x38] sm:$0xff] %v755
      %788 = vst [vmem:[#allocation8 + $0x40] sm:$0xff] %v756
      %789 = vst [vmem:[#allocation8 + $0x48] sm:$0xff] %v757
      %790 = vst [vmem:[#allocation8 + $0x50] sm:$0xff] %v758
      %791 = vst [vmem:[#allocation8 + $0x58] sm:$0xff] %v759
      %792 = vst [vmem:[#allocation8 + $0x60] sm:$0xff] %v760
      %793 = vst [vmem:[#allocation8 + $0x68] sm:$0xff] %v761
      %794 = vst [vmem:[#allocation8 + $0x70] sm:$0xff] %v762
      %795 = vst [vmem:[#allocation8 + $0x78] sm:$0xff] %v763
      %796 = vst [vmem:[#allocation8 + $0x80] sm:$0xff] %v764
      %797 = vst [vmem:[#allocation8 + $0x88] sm:$0xff] %v765
      %798 = vst [vmem:[#allocation8 + $0x90] sm:$0xff] %v766
      %799 = vst [vmem:[#allocation8 + $0x98] sm:$0xff] %v767
      %800 = vst [vmem:[#allocation8 + $0xa0] sm:$0xff] %v768
      %801 = vst [vmem:[#allocation8 + $0xa8] sm:$0xff] %v769
      %802 = vst [vmem:[#allocation8 + $0xb0] sm:$0xff] %v770
      %803 = vst [vmem:[#allocation8 + $0xb8] sm:$0xff] %v771
      %804 = vst [vmem:[#allocation8 + $0xc0] sm:$0xff] %v772
      %805 = vst [vmem:[#allocation8 + $0xc8] sm:$0xff] %v773
      %806 = vst [vmem:[#allocation8 + $0xd0] sm:$0xff] %v774
      %807 = vst [vmem:[#allocation8 + $0xd8] sm:$0xff] %v775
      %808 = vst [vmem:[#allocation8 + $0xe0] sm:$0xff] %v776
      %809 = vst [vmem:[#allocation8 + $0xe8] sm:$0xff] %v777
      %810 = vst [vmem:[#allocation8 + $0xf0] sm:$0xff] %v778
      %811 = vst [vmem:[#allocation8 + $0xf8] sm:$0xff] %v779
    $region29: #{tpu_custom_call.1} parent=1 // pred_fallthru
      _
    // Predicated region
    $region30: #{tpu_custom_call.1} parent=1 // pred_check
      _
    $region31: #{tpu_custom_call.1} parent=1 // pred_check_branch
      %813 = sbr.rel (0) target = $region33
    $region32: #{tpu_custom_call.1} parent=1 // pred_region
      %815 = vsyncadd [#allocation5], 0
      %s816 = sshll.u32 [#allocation8], 4
      %s817 = int_to_ptr.vmem [resolvable:$true] %s816
      %s818 = sshll.u32 %s3, 4
      %s819 = int_to_ptr.hbm [resolvable:$true] %s818
      %824 = dma.vmem_to_hbm [thread:$0]  %s817, 4096, %s819, [#allocation5], 128, 128, 8
    $region33: #{tpu_custom_call.1} parent=1 // pred_fallthru
      _
    // Predicated region
    $region34: #{tpu_custom_call.1} parent=1 // pred_check
      _
    $region35: #{tpu_custom_call.1} parent=1 // pred_check_branch
      %826 = sbr.rel (0) target = $region37
    $region36: #{tpu_custom_call.1} parent=1 // pred_region
      %828 = dma.done [#allocation5], 4096
    $region37: #{tpu_custom_call.1} parent=1 // pred_fallthru
      _
    %829 = vsyncpa [#allocation4], 1
    %830 = vsyncpa [#allocation7], 1
    %831 = vsyncpa [#allocation5], 1

</llo_original>
